<compile_context>
chip_gen: v6e
topology: v6e:2x2x1
jax: 0.10.0
libtpu: 0.0.40
codegen_flags: <defaults>
</compile_context>

<pallas_src>
import jax
import jax.numpy as jnp
from jax.experimental import pallas as pl
from jax.experimental.pallas import tpu as pltpu

STATE_SIZE = 4      # CartPole-v0 observation dim
STATE_PAD = 8       # sublane-aligned K for the first matmul
HIDDEN1 = 128
HIDDEN2 = 256
OUT_DIM = 1


def critic_kernel(x_ref, w1_ref, b1_ref, w2_ref, b2_ref, w3_ref, b3_ref,
                  out_ref):
    # x_ref : (STATE_PAD, TB)   -- batch on lanes
    # w1_ref: (128, STATE_PAD)  w2_ref: (256, 128)   (PyTorch (out, in) layout)
    # b1_ref: (128, 1)          b2_ref: (256, 1)
    # w3_ref: (256, 1)          b3_ref: (1, 1) in SMEM
    # out   : (1, TB)           -- lane-dense value row
    x = x_ref[...]

    # linear1 + ReLU  -> (128, TB)
    h1 = jnp.dot(w1_ref[...], x, preferred_element_type=jnp.float32)
    h1 = jnp.maximum(h1 + b1_ref[...], 0.0)

    # linear2 + ReLU  -> (256, TB)   (dominant MXU op: 256x128 @ 128xTB)
    h2 = jnp.dot(w2_ref[...], h1, preferred_element_type=jnp.float32)
    h2 = jnp.maximum(h2 + b2_ref[...], 0.0)

    # value head on VPU + sublane reduce (avoids an M=1 MXU matmul) -> (1, TB)
    v = jnp.sum(h2 * w3_ref[...], axis=0, keepdims=True)
    out_ref[...] = v + b3_ref[0, 0]


def critic_forward(state, params, *, tb=256):
    """state: (B, STATE_SIZE) f32. Returns (B, 1) f32."""
    (w1, b1), (w2, b2), (w3, b3) = params
    B, S = state.shape
    assert S == STATE_SIZE

    num_tiles = int(pl.cdiv(B, tb))
    b_pad = num_tiles * tb

    # (features, batch) layout: transpose + zero-pad the state to (8, B_pad).
    x_t = jnp.zeros((STATE_PAD, b_pad), jnp.float32)
    x_t = x_t.at[:S, :B].set(state.T.astype(jnp.float32))

    # Zero-pad w1's input dim 4 -> 8; biases as columns; w3 as a (256,1) column.
    w1p = jnp.zeros((HIDDEN1, STATE_PAD), w1.dtype).at[:, :S].set(w1)
    b1c = b1.reshape(HIDDEN1, 1)
    b2c = b2.reshape(HIDDEN2, 1)
    w3c = w3.reshape(HIDDEN2, 1)
    b3s = b3.reshape(1, 1).astype(jnp.float32)

    out = pl.pallas_call(
        critic_kernel,
        out_shape=jax.ShapeDtypeStruct((1, b_pad), jnp.float32),
        grid=(num_tiles,),
        in_specs=[
            # streamed batch tiles (auto double-buffered)
            pl.BlockSpec((STATE_PAD, tb), lambda i: (0, i)),
            # weights / biases: constant block index -> VMEM-resident
            pl.BlockSpec((HIDDEN1, STATE_PAD), lambda i: (0, 0)),
            pl.BlockSpec((HIDDEN1, 1), lambda i: (0, 0)),
            pl.BlockSpec((HIDDEN2, HIDDEN1), lambda i: (0, 0)),
            pl.BlockSpec((HIDDEN2, 1), lambda i: (0, 0)),
            pl.BlockSpec((HIDDEN2, 1), lambda i: (0, 0)),
            # scalar output bias in SMEM
            pl.BlockSpec(memory_space=pltpu.MemorySpace.SMEM),
        ],
        out_specs=pl.BlockSpec((1, tb), lambda i: (0, i)),
        compiler_params=pltpu.CompilerParams(
            dimension_semantics=("parallel",)),
    )(x_t, w1p, b1c, w2, b2c, w3c, b3s)

    # (1, B_pad) -> (B, 1): drop batch padding, flip to column vector.
    return out[:, :B].reshape(B, OUT_DIM)


def init_params(key, dtype=jnp.float32):
    """PyTorch nn.Linear default init: U(-1/sqrt(fan_in), 1/sqrt(fan_in));
    weights stored in PyTorch (out_features, in_features) layout."""
    def linear(key, fan_in, fan_out):
        kw, kb = jax.random.split(key)
        bound = 1.0 / (fan_in ** 0.5)
        w = jax.random.uniform(kw, (fan_out, fan_in), dtype,
                               minval=-bound, maxval=bound)
        b = jax.random.uniform(kb, (fan_out,), dtype,
                               minval=-bound, maxval=bound)
        return w, b

    k1, k2, k3 = jax.random.split(key, 3)
    return (linear(k1, STATE_SIZE, HIDDEN1),
            linear(k2, HIDDEN1, HIDDEN2),
            linear(k3, HIDDEN2, OUT_DIM))


def critic_ref(state, params):
    """Pure-JAX reference matching the PyTorch forward exactly."""
    (w1, b1), (w2, b2), (w3, b3) = params
    h1 = jnp.maximum(state @ w1.T + b1, 0.0)
    h2 = jnp.maximum(h1 @ w2.T + b2, 0.0)
    return h2 @ w3.T + b3


if __name__ == "__main__":
    key = jax.random.PRNGKey(0)
    k_params, k_state = jax.random.split(key)

    params = init_params(k_params)
    batch = 2
    state = jax.random.normal(k_state, (batch, STATE_SIZE), jnp.float32)

    value = jax.block_until_ready(critic_forward(state, params))
    expected = critic_ref(state, params)

    assert value.shape == (batch, OUT_DIM), value.shape
    assert jnp.allclose(value, expected, atol=1e-4, rtol=1e-4), (
        f"mismatch: {value} vs {expected}")

    print("KERNEL_OK")
</pallas_src>

<mosaic_0001>
module attributes {stable_mosaic.version = 11 : i64} {
  func.func @critic_kernel(%arg0: i32, %arg1: memref<8x256xf32, #tpu.memory_space<vmem>>, %arg2: memref<128x8xf32, #tpu.memory_space<vmem>>, %arg3: memref<128x1xf32, #tpu.memory_space<vmem>>, %arg4: memref<256x128xf32, #tpu.memory_space<vmem>>, %arg5: memref<256x1xf32, #tpu.memory_space<vmem>>, %arg6: memref<256x1xf32, #tpu.memory_space<vmem>>, %arg7: memref<1x1xf32, #tpu.memory_space<smem>>, %arg8: memref<1x256xf32, #tpu.memory_space<vmem>>) attributes {dimension_semantics = [#tpu.dimension_semantics<parallel>], iteration_bounds = array<i64: 1>, scalar_prefetch = 0 : i64, scratch_operands = 0 : i64, tpu.core_type = #tpu.core_type<tc>, window_params = [{transform_indices = @transform_0, window_bounds = array<i64: 8, 256>}, {pipeline_mode = #tpu.pipeline_mode<synchronous>, transform_indices = @transform_1, window_bounds = array<i64: 128, 8>}, {pipeline_mode = #tpu.pipeline_mode<synchronous>, transform_indices = @transform_2, window_bounds = array<i64: 128, 1>}, {pipeline_mode = #tpu.pipeline_mode<synchronous>, transform_indices = @transform_3, window_bounds = array<i64: 256, 128>}, {pipeline_mode = #tpu.pipeline_mode<synchronous>, transform_indices = @transform_4, window_bounds = array<i64: 256, 1>}, {pipeline_mode = #tpu.pipeline_mode<synchronous>, transform_indices = @transform_5, window_bounds = array<i64: 256, 1>}, {transform_indices = @transform_6, window_bounds = array<i64: 1, 1>}, {transform_indices = @transform_7, window_bounds = array<i64: 1, 256>}]} {
    %c0 = arith.constant 0 : index
    %c0_0 = arith.constant 0 : index
    %0 = vector.load %arg1[%c0, %c0_0] : memref<8x256xf32, #tpu.memory_space<vmem>>, vector<8x256xf32>
    %c0_1 = arith.constant 0 : index
    %c0_2 = arith.constant 0 : index
    %1 = vector.load %arg2[%c0_1, %c0_2] : memref<128x8xf32, #tpu.memory_space<vmem>>, vector<128x8xf32>
    %cst = arith.constant dense<0.000000e+00> : vector<128x256xf32>
    %2 = tpu.matmul %1, %0, %cst {dimension_numbers = #tpu.dot_dimension_numbers<[1], [0], [0], [1], [0, 0, 1, 1], [], []>} : vector<128x8xf32>, vector<8x256xf32>, vector<128x256xf32> -> vector<128x256xf32>
    %c0_3 = arith.constant 0 : index
    %c0_4 = arith.constant 0 : index
    %3 = vector.load %arg3[%c0_3, %c0_4] : memref<128x1xf32, #tpu.memory_space<vmem>>, vector<128x1xf32>
    %4 = vector.broadcast %3 : vector<128x1xf32> to vector<128x256xf32>
    %5 = arith.addf %2, %4 : vector<128x256xf32>
    %cst_5 = arith.constant 0.000000e+00 : f32
    %6 = vector.broadcast %cst_5 : f32 to vector<128x256xf32>
    %7 = arith.maximumf %5, %6 : vector<128x256xf32>
    %c0_6 = arith.constant 0 : index
    %c0_7 = arith.constant 0 : index
    %8 = vector.load %arg4[%c0_6, %c0_7] : memref<256x128xf32, #tpu.memory_space<vmem>>, vector<256x128xf32>
    %cst_8 = arith.constant dense<0.000000e+00> : vector<256x256xf32>
    %9 = tpu.matmul %8, %7, %cst_8 {dimension_numbers = #tpu.dot_dimension_numbers<[1], [0], [0], [1], [0, 0, 1, 1], [], []>} : vector<256x128xf32>, vector<128x256xf32>, vector<256x256xf32> -> vector<256x256xf32>
    %c0_9 = arith.constant 0 : index
    %c0_10 = arith.constant 0 : index
    %10 = vector.load %arg5[%c0_9, %c0_10] : memref<256x1xf32, #tpu.memory_space<vmem>>, vector<256x1xf32>
    %11 = vector.broadcast %10 : vector<256x1xf32> to vector<256x256xf32>
    %12 = arith.addf %9, %11 : vector<256x256xf32>
    %cst_11 = arith.constant 0.000000e+00 : f32
    %13 = vector.broadcast %cst_11 : f32 to vector<256x256xf32>
    %14 = arith.maximumf %12, %13 : vector<256x256xf32>
    %c0_12 = arith.constant 0 : index
    %c0_13 = arith.constant 0 : index
    %15 = vector.load %arg6[%c0_12, %c0_13] : memref<256x1xf32, #tpu.memory_space<vmem>>, vector<256x1xf32>
    %16 = vector.broadcast %15 : vector<256x1xf32> to vector<256x256xf32>
    %17 = arith.mulf %14, %16 : vector<256x256xf32>
    %cst_14 = arith.constant dense<0.000000e+00> : vector<256xf32>
    %18 = vector.multi_reduction <add>, %17, %cst_14 [0] : vector<256x256xf32> to vector<256xf32>
    %19 = vector.shape_cast %18 : vector<256xf32> to vector<1x256xf32>
    %c0_15 = arith.constant 0 : index
    %c0_16 = arith.constant 0 : index
    %20 = memref.load %arg7[%c0_15, %c0_16] : memref<1x1xf32, #tpu.memory_space<smem>>
    %21 = vector.broadcast %20 : f32 to vector<1x256xf32>
    %22 = arith.addf %19, %21 : vector<1x256xf32>
    %c0_17 = arith.constant 0 : index
    %c0_18 = arith.constant 0 : index
    %23 = vector.load %arg8[%c0_17, %c0_18] : memref<1x256xf32, #tpu.memory_space<vmem>>, vector<1x256xf32>
    tpu.vector_store %arg8[%c0_17, %c0_18], %22 {strides = array<i32>} : memref<1x256xf32, #tpu.memory_space<vmem>>, vector<1x256xf32>,
    return
  }
  func.func @transform_0(%arg0: i32) -> (i32, i32) {
    %c0_i32 = arith.constant 0 : i32
    %c0_i32_0 = arith.constant 0 : i32
    return %c0_i32, %arg0 : i32, i32
  }
  func.func @transform_1(%arg0: i32) -> (i32, i32) {
    %c0_i32 = arith.constant 0 : i32
    %c0_i32_0 = arith.constant 0 : i32
    %c0_i32_1 = arith.constant 0 : i32
    return %c0_i32, %c0_i32_0 : i32, i32
  }
  func.func @transform_2(%arg0: i32) -> (i32, i32) {
    %c0_i32 = arith.constant 0 : i32
    %c0_i32_0 = arith.constant 0 : i32
    %c0_i32_1 = arith.constant 0 : i32
    return %c0_i32, %c0_i32_0 : i32, i32
  }
  func.func @transform_3(%arg0: i32) -> (i32, i32) {
    %c0_i32 = arith.constant 0 : i32
    %c0_i32_0 = arith.constant 0 : i32
    %c0_i32_1 = arith.constant 0 : i32
    return %c0_i32, %c0_i32_0 : i32, i32
  }
  func.func @transform_4(%arg0: i32) -> (i32, i32) {
    %c0_i32 = arith.constant 0 : i32
    %c0_i32_0 = arith.constant 0 : i32
    %c0_i32_1 = arith.constant 0 : i32
    return %c0_i32, %c0_i32_0 : i32, i32
  }
  func.func @transform_5(%arg0: i32) -> (i32, i32) {
    %c0_i32 = arith.constant 0 : i32
    %c0_i32_0 = arith.constant 0 : i32
    %c0_i32_1 = arith.constant 0 : i32
    return %c0_i32, %c0_i32_0 : i32, i32
  }
  func.func @transform_6(%arg0: i32) -> (i32, i32) {
    %c0_i32 = arith.constant 0 : i32
    %c0_i32_0 = arith.constant 0 : i32
    %c0_i32_1 = arith.constant 0 : i32
    return %c0_i32, %c0_i32_0 : i32, i32
  }
  func.func @transform_7(%arg0: i32) -> (i32, i32) {
    %c0_i32 = arith.constant 0 : i32
    %c0_i32_0 = arith.constant 0 : i32
    return %c0_i32, %arg0 : i32, i32
  }
}

</mosaic_0001>

<llo_original>
// kernel: tpu_custom_call.1
$region0: #{tpu_custom_call.1}
  #allocation0 [shape = 'u32[]', space=smem, size = 0x4, offset = 0x4, fixed_abs, tag = 'smem constant byte address 0x4 - core index']
  #allocation1 [shape = 'u32[144,128]{1,0:T(1,128)}', space=vmem, size = 0x12000, scoped, tag = 'internal scratch']
  #allocation2 [shape = 'f32[1,1]{1,0:T(1,128)S(6)}', space=smem, size = 0x200, scoped, tag = 'scoped memory for tpu_custom_call.1']
  %s0 = inlined_call_operand.vmem [shape: f32[8,256], index: 0, kind: input, shape index: {}]
  %s1 = inlined_call_operand.vmem [shape: f32[128,8], index: 1, kind: input, shape index: {}]
  %s2 = inlined_call_operand.vmem [shape: f32[128,1], index: 2, kind: input, shape index: {}]
  %s3 = inlined_call_operand.vmem [shape: f32[256,128], index: 3, kind: input, shape index: {}]
  %s4 = inlined_call_operand.vmem [shape: f32[256,1], index: 4, kind: input, shape index: {}]
  %s5 = inlined_call_operand.vmem [shape: f32[256,1], index: 5, kind: input, shape index: {}]
  %s6 = inlined_call_operand.<no memory space> [shape: f32[1,1], index: 6, kind: input, shape index: {}]
  %s7 = inlined_call_operand.hbm [shape: f32[1,256], index: 7, kind: output, shape index: {}]
  %s8 = sld [smem:[#allocation0]]
  $region38: #{tpu_custom_call.1} parent=0
    _
  %s10 = ssub.s32 1, %s8
  %s11 = scalar_select 0, %s10, %s8
  %12 = sst [smem:[#allocation2]] %s6
  $region1: #{tpu_custom_call.1} parent=0
    #allocation3 [shape = 'u8[1024]{0}', space=vmem, size = 0x400, scoped, tag = 'output window, operand 0, single buffered']
    #allocation4 [shape = 's32[1]{0}', space=sflag, size = 0x4, scoped, tag = 'scoped memory for tpu_custom_call.1']
    %13 = vsyncpa [#allocation4], 0
    // Predicated region
    $region2: #{tpu_custom_call.1} parent=1 // pred_check
      _
    $region3: #{tpu_custom_call.1} parent=1 // pred_check_branch
      %15 = sbr.rel (0) target = $region5
    $region4: #{tpu_custom_call.1} parent=1 // pred_region
      _
    $region5: #{tpu_custom_call.1} parent=1 // pred_fallthru
      _
    // Predicated region
    $region6: #{tpu_custom_call.1} parent=1 // pred_check
      _
    $region7: #{tpu_custom_call.1} parent=1 // pred_check_branch
      %17 = sbr.rel (0) target = $region9
    $region8: #{tpu_custom_call.1} parent=1 // pred_region
      _
    $region9: #{tpu_custom_call.1} parent=1 // pred_fallthru
      _
    // Predicated region
    $region10: #{tpu_custom_call.1} parent=1 // pred_check
      _
    $region11: #{tpu_custom_call.1} parent=1 // pred_check_branch
      %19 = sbr.rel (0) target = $region13
    $region12: #{tpu_custom_call.1} parent=1 // pred_region
      _
    $region13: #{tpu_custom_call.1} parent=1 // pred_fallthru
      _
    // Predicated region
    $region14: #{tpu_custom_call.1} parent=1 // pred_check
      _
    $region15: #{tpu_custom_call.1} parent=1 // pred_check_branch
      %21 = sbr.rel (0) target = $region17
    $region16: #{tpu_custom_call.1} parent=1 // pred_region
      _
    $region17: #{tpu_custom_call.1} parent=1 // pred_fallthru
      _
    // Predicated region
    $region18: #{tpu_custom_call.1} parent=1 // pred_check
      _
    $region19: #{tpu_custom_call.1} parent=1 // pred_check_branch
      %23 = sbr.rel (0) target = $region21
    $region20: #{tpu_custom_call.1} parent=1 // pred_region
      _
    $region21: #{tpu_custom_call.1} parent=1 // pred_fallthru
      _
    // Predicated region
    $region22: #{tpu_custom_call.1} parent=1 // pred_check
      _
    $region23: #{tpu_custom_call.1} parent=1 // pred_check_branch
      %25 = sbr.rel (0) target = $region25
    $region24: #{tpu_custom_call.1} parent=1 // pred_region
      _
    $region25: #{tpu_custom_call.1} parent=1 // pred_fallthru
      _
    // Predicated region
    $region26: #{tpu_custom_call.1} parent=1 // pred_check
      _
    $region27: #{tpu_custom_call.1} parent=1 // pred_check_branch
      %27 = sbr.rel (0) target = $region29
    $region28: #{tpu_custom_call.1} parent=1 // pred_region
      _
    $region29: #{tpu_custom_call.1} parent=1 // pred_fallthru
      _
    %v28 = vld [vmem:[%s0] sm:$0xff]
    %v29 = vld [vmem:[%s0 + $0x8] sm:$0xff]
    %v30 = vld [vmem:[%s1] sm:$0xff]
    %v31 = vld [vmem:[%s1 + $0x8] sm:$0xff]
    %v32 = vld [vmem:[%s1 + $0x10] sm:$0xff]
    %v33 = vld [vmem:[%s1 + $0x18] sm:$0xff]
    %v34 = vld [vmem:[%s1 + $0x20] sm:$0xff]
    %v35 = vld [vmem:[%s1 + $0x28] sm:$0xff]
    %v36 = vld [vmem:[%s1 + $0x30] sm:$0xff]
    %v37 = vld [vmem:[%s1 + $0x38] sm:$0xff]
    %v38 = vld [vmem:[%s1 + $0x40] sm:$0xff]
    %v39 = vld [vmem:[%s1 + $0x48] sm:$0xff]
    %v40 = vld [vmem:[%s1 + $0x50] sm:$0xff]
    %v41 = vld [vmem:[%s1 + $0x58] sm:$0xff]
    %v42 = vld [vmem:[%s1 + $0x60] sm:$0xff]
    %v43 = vld [vmem:[%s1 + $0x68] sm:$0xff]
    %v44 = vld [vmem:[%s1 + $0x70] sm:$0xff]
    %v45 = vld [vmem:[%s1 + $0x78] sm:$0xff]
    %v46 = vld [vmem:[%s2] sm:$0xff]
    %v47 = vld [vmem:[%s2 + $0x8] sm:$0xff]
    %v48 = vld [vmem:[%s2 + $0x10] sm:$0xff]
    %v49 = vld [vmem:[%s2 + $0x18] sm:$0xff]
    %v50 = vld [vmem:[%s2 + $0x20] sm:$0xff]
    %v51 = vld [vmem:[%s2 + $0x28] sm:$0xff]
    %v52 = vld [vmem:[%s2 + $0x30] sm:$0xff]
    %v53 = vld [vmem:[%s2 + $0x38] sm:$0xff]
    %v54 = vld [vmem:[%s2 + $0x40] sm:$0xff]
    %v55 = vld [vmem:[%s2 + $0x48] sm:$0xff]
    %v56 = vld [vmem:[%s2 + $0x50] sm:$0xff]
    %v57 = vld [vmem:[%s2 + $0x58] sm:$0xff]
    %v58 = vld [vmem:[%s2 + $0x60] sm:$0xff]
    %v59 = vld [vmem:[%s2 + $0x68] sm:$0xff]
    %v60 = vld [vmem:[%s2 + $0x70] sm:$0xff]
    %v61 = vld [vmem:[%s2 + $0x78] sm:$0xff]
    %63 = vset.pattern.permute.xlu0 0
    %64 = vperm.xlu0 %63, %v46
    %v65 = vpop.permute.xlu0 %64
    %68 = vset.pattern.permute.xlu0 0
    %69 = vperm.xlu0 %68, %v47
    %v70 = vpop.permute.xlu0 %69
    %73 = vset.pattern.permute.xlu0 0
    %74 = vperm.xlu0 %73, %v48
    %v75 = vpop.permute.xlu0 %74
    %78 = vset.pattern.permute.xlu0 0
    %79 = vperm.xlu0 %78, %v49
    %v80 = vpop.permute.xlu0 %79
    %83 = vset.pattern.permute.xlu0 0
    %84 = vperm.xlu0 %83, %v50
    %v85 = vpop.permute.xlu0 %84
    %88 = vset.pattern.permute.xlu0 0
    %89 = vperm.xlu0 %88, %v51
    %v90 = vpop.permute.xlu0 %89
    %93 = vset.pattern.permute.xlu0 0
    %94 = vperm.xlu0 %93, %v52
    %v95 = vpop.permute.xlu0 %94
    %98 = vset.pattern.permute.xlu0 0
    %99 = vperm.xlu0 %98, %v53
    %v100 = vpop.permute.xlu0 %99
    %103 = vset.pattern.permute.xlu0 0
    %104 = vperm.xlu0 %103, %v54
    %v105 = vpop.permute.xlu0 %104
    %108 = vset.pattern.permute.xlu0 0
    %109 = vperm.xlu0 %108, %v55
    %v110 = vpop.permute.xlu0 %109
    %113 = vset.pattern.permute.xlu0 0
    %114 = vperm.xlu0 %113, %v56
    %v115 = vpop.permute.xlu0 %114
    %118 = vset.pattern.permute.xlu0 0
    %119 = vperm.xlu0 %118, %v57
    %v120 = vpop.permute.xlu0 %119
    %123 = vset.pattern.permute.xlu0 0
    %124 = vperm.xlu0 %123, %v58
    %v125 = vpop.permute.xlu0 %124
    %128 = vset.pattern.permute.xlu0 0
    %129 = vperm.xlu0 %128, %v59
    %v130 = vpop.permute.xlu0 %129
    %133 = vset.pattern.permute.xlu0 0
    %134 = vperm.xlu0 %133, %v60
    %v135 = vpop.permute.xlu0 %134
    %138 = vset.pattern.permute.xlu0 0
    %139 = vperm.xlu0 %138, %v61
    %v140 = vpop.permute.xlu0 %139
    %vm142 = vcmask 64512
    %v144 = vsel %vm142, %v30, 0
    %v147 = vsel %vm142, %v31, 0
    %v150 = vsel %vm142, %v32, 0
    %v153 = vsel %vm142, %v33, 0
    %v156 = vsel %vm142, %v34, 0
    %v159 = vsel %vm142, %v35, 0
    %v162 = vsel %vm142, %v36, 0
    %v165 = vsel %vm142, %v37, 0
    %v168 = vsel %vm142, %v38, 0
    %v171 = vsel %vm142, %v39, 0
    %v174 = vsel %vm142, %v40, 0
    %v177 = vsel %vm142, %v41, 0
    %v180 = vsel %vm142, %v42, 0
    %v183 = vsel %vm142, %v43, 0
    %v186 = vsel %vm142, %v44, 0
    %v189 = vsel %vm142, %v45, 0
    %191 = vmatprep.subr.mxu0 0.0
    %192 = vmatpush1.msra.mxu0 0.0
    %193 = vmatprep.subr.mxu0 0.0
    %194 = vmatpush1.msra.mxu0 0.0
    %195 = vmatprep.subr.mxu0 0.0
    %196 = vmatpush1.msra.mxu0 0.0
    %197 = vmatprep.subr.mxu0 0.0
    %198 = vmatpush1.msra.mxu0 0.0
    %199 = vmatprep.subr.mxu0 0.0
    %200 = vmatpush1.msra.mxu0 0.0
    %201 = vmatprep.subr.mxu0 0.0
    %202 = vmatpush1.msra.mxu0 0.0
    %203 = vmatprep.subr.mxu0 0.0
    %204 = vmatpush1.msra.mxu0 0.0
    %205 = vmatprep.subr.mxu0 0.0
    %206 = vmatpush1.msra.mxu0 0.0
    %207 = vmatprep.subr.mxu0 0.0
    %208 = vmatpush1.msra.mxu0 0.0
    %209 = vmatprep.subr.mxu0 0.0
    %210 = vmatpush1.msra.mxu0 0.0
    %211 = vmatprep.subr.mxu0 0.0
    %212 = vmatpush1.msra.mxu0 0.0
    %213 = vmatprep.subr.mxu0 0.0
    %214 = vmatpush1.msra.mxu0 0.0
    %215 = vmatprep.subr.mxu0 0.0
    %216 = vmatpush1.msra.mxu0 0.0
    %217 = vmatprep.subr.mxu0 0.0
    %218 = vmatpush1.msra.mxu0 0.0
    %219 = vmatprep.subr.mxu0 0.0
    %220 = vmatpush1.msra.mxu0 0.0
    %221 = vmatprep.subr.mxu0 %v29
    %222 = vmatpush1.msra.mxu0 %v28
    %223 = vmatprep.subr.mxu0 0.0
    %224 = vmatpush2.msra.mxu0 0.0
    %225 = vmatprep.subr.mxu0 0.0
    %226 = vmatpush2.msra.mxu0 0.0
    %227 = vmatprep.subr.mxu0 0.0
    %228 = vmatpush2.msra.mxu0 0.0
    %229 = vmatprep.subr.mxu0 0.0
    %230 = vmatpush2.msra.mxu0 0.0
    %231 = vmatprep.subr.mxu0 0.0
    %232 = vmatpush2.msra.mxu0 0.0
    %233 = vmatprep.subr.mxu0 0.0
    %234 = vmatpush2.msra.mxu0 0.0
    %235 = vmatprep.subr.mxu0 0.0
    %236 = vmatpush2.msra.mxu0 0.0
    %237 = vmatprep.subr.mxu0 0.0
    %238 = vmatpush2.msra.mxu0 0.0
    %239 = vmatprep.subr.mxu0 0.0
    %240 = vmatpush2.msra.mxu0 0.0
    %241 = vmatprep.subr.mxu0 0.0
    %242 = vmatpush2.msra.mxu0 0.0
    %243 = vmatprep.subr.mxu0 0.0
    %244 = vmatpush2.msra.mxu0 0.0
    %245 = vmatprep.subr.mxu0 0.0
    %246 = vmatpush2.msra.mxu0 0.0
    %247 = vmatprep.subr.mxu0 0.0
    %248 = vmatpush2.msra.mxu0 0.0
    %249 = vmatprep.subr.mxu0 0.0
    %250 = vmatpush2.msra.mxu0 0.0
    %251 = vmatprep.subr.mxu0 0.0
    %252 = vmatpush2.msra.mxu0 0.0
    %253 = vmatprep.subr.mxu0 0.0
    %254 = vmatpush2.msra.mxu0 0.0
    %255 = vmatprep.mubr.f32.mxu0 0.0
    %256 = vmatmul.mubr.f32.gmra.mxu0 %v144
    %v257 = vpop.f32.mrf.mxu0
    %v258 = vadd.f32 %v65, %v257
    %v259 = vpop.f32.mrf.mxu0
    %v260 = vadd.f32 %v65, %v259
    %261 = vmatprep.mubr.f32.mxu0 0.0
    %262 = vmatmul.mubr.f32.gmra.mxu0 %v147
    %v263 = vpop.f32.mrf.mxu0
    %v264 = vadd.f32 %v70, %v263
    %v265 = vpop.f32.mrf.mxu0
    %v266 = vadd.f32 %v70, %v265
    %267 = vmatprep.mubr.f32.mxu0 0.0
    %268 = vmatmul.mubr.f32.gmra.mxu0 %v150
    %v269 = vpop.f32.mrf.mxu0
    %v270 = vadd.f32 %v75, %v269
    %v271 = vpop.f32.mrf.mxu0
    %v272 = vadd.f32 %v75, %v271
    %273 = vmatprep.mubr.f32.mxu0 0.0
    %274 = vmatmul.mubr.f32.gmra.mxu0 %v153
    %v275 = vpop.f32.mrf.mxu0
    %v276 = vadd.f32 %v80, %v275
    %v277 = vpop.f32.mrf.mxu0
    %v278 = vadd.f32 %v80, %v277
    %279 = vmatprep.mubr.f32.mxu0 0.0
    %280 = vmatmul.mubr.f32.gmra.mxu0 %v156
    %v281 = vpop.f32.mrf.mxu0
    %v282 = vadd.f32 %v85, %v281
    %v283 = vpop.f32.mrf.mxu0
    %v284 = vadd.f32 %v85, %v283
    %285 = vmatprep.mubr.f32.mxu0 0.0
    %286 = vmatmul.mubr.f32.gmra.mxu0 %v159
    %v287 = vpop.f32.mrf.mxu0
    %v288 = vadd.f32 %v90, %v287
    %v289 = vpop.f32.mrf.mxu0
    %v290 = vadd.f32 %v90, %v289
    %291 = vmatprep.mubr.f32.mxu0 0.0
    %292 = vmatmul.mubr.f32.gmra.mxu0 %v162
    %v293 = vpop.f32.mrf.mxu0
    %v294 = vadd.f32 %v95, %v293
    %v295 = vpop.f32.mrf.mxu0
    %v296 = vadd.f32 %v95, %v295
    %297 = vmatprep.mubr.f32.mxu0 0.0
    %298 = vmatmul.mubr.f32.gmra.mxu0 %v165
    %v299 = vpop.f32.mrf.mxu0
    %v300 = vadd.f32 %v100, %v299
    %v301 = vpop.f32.mrf.mxu0
    %v302 = vadd.f32 %v100, %v301
    %303 = vmatprep.mubr.f32.mxu0 0.0
    %304 = vmatmul.mubr.f32.gmra.mxu0 %v168
    %v305 = vpop.f32.mrf.mxu0
    %v306 = vadd.f32 %v105, %v305
    %v307 = vpop.f32.mrf.mxu0
    %v308 = vadd.f32 %v105, %v307
    %309 = vmatprep.mubr.f32.mxu0 0.0
    %310 = vmatmul.mubr.f32.gmra.mxu0 %v171
    %v311 = vpop.f32.mrf.mxu0
    %v312 = vadd.f32 %v110, %v311
    %v313 = vpop.f32.mrf.mxu0
    %v314 = vadd.f32 %v110, %v313
    %315 = vmatprep.mubr.f32.mxu0 0.0
    %316 = vmatmul.mubr.f32.gmra.mxu0 %v174
    %v317 = vpop.f32.mrf.mxu0
    %v318 = vadd.f32 %v115, %v317
    %v319 = vpop.f32.mrf.mxu0
    %v320 = vadd.f32 %v115, %v319
    %321 = vmatprep.mubr.f32.mxu0 0.0
    %322 = vmatmul.mubr.f32.gmra.mxu0 %v177
    %v323 = vpop.f32.mrf.mxu0
    %v324 = vadd.f32 %v120, %v323
    %v325 = vpop.f32.mrf.mxu0
    %v326 = vadd.f32 %v120, %v325
    %327 = vmatprep.mubr.f32.mxu0 0.0
    %328 = vmatmul.mubr.f32.gmra.mxu0 %v180
    %v329 = vpop.f32.mrf.mxu0
    %v330 = vadd.f32 %v125, %v329
    %v331 = vpop.f32.mrf.mxu0
    %v332 = vadd.f32 %v125, %v331
    %333 = vmatprep.mubr.f32.mxu0 0.0
    %334 = vmatmul.mubr.f32.gmra.mxu0 %v183
    %v335 = vpop.f32.mrf.mxu0
    %v336 = vadd.f32 %v130, %v335
    %v337 = vpop.f32.mrf.mxu0
    %v338 = vadd.f32 %v130, %v337
    %339 = vmatprep.mubr.f32.mxu0 0.0
    %340 = vmatmul.mubr.f32.gmra.mxu0 %v186
    %v341 = vpop.f32.mrf.mxu0
    %v342 = vadd.f32 %v135, %v341
    %v343 = vpop.f32.mrf.mxu0
    %v344 = vadd.f32 %v135, %v343
    %345 = vmatprep.mubr.f32.mxu0 0.0
    %346 = vmatmul.mubr.f32.gmra.mxu0 %v189
    %v347 = vpop.f32.mrf.mxu0
    %v348 = vadd.f32 %v140, %v347
    %v349 = vpop.f32.mrf.mxu0
    %v350 = vadd.f32 %v140, %v349
    %351 = vdwg.mxu0
    %v352 = vmax.f32 %v258, 0.0
    %v353 = vmax.f32 %v260, 0.0
    %v354 = vmax.f32 %v264, 0.0
    %v355 = vmax.f32 %v266, 0.0
    %v356 = vmax.f32 %v270, 0.0
    %v357 = vmax.f32 %v272, 0.0
    %v358 = vmax.f32 %v276, 0.0
    %v359 = vmax.f32 %v278, 0.0
    %v360 = vmax.f32 %v282, 0.0
    %v361 = vmax.f32 %v284, 0.0
    %v362 = vmax.f32 %v288, 0.0
    %v363 = vmax.f32 %v290, 0.0
    %v364 = vmax.f32 %v294, 0.0
    %v365 = vmax.f32 %v296, 0.0
    %v366 = vmax.f32 %v300, 0.0
    %v367 = vmax.f32 %v302, 0.0
    %v368 = vmax.f32 %v306, 0.0
    %v369 = vmax.f32 %v308, 0.0
    %v370 = vmax.f32 %v312, 0.0
    %v371 = vmax.f32 %v314, 0.0
    %v372 = vmax.f32 %v318, 0.0
    %v373 = vmax.f32 %v320, 0.0
    %v374 = vmax.f32 %v324, 0.0
    %v375 = vmax.f32 %v326, 0.0
    %v376 = vmax.f32 %v330, 0.0
    %v377 = vmax.f32 %v332, 0.0
    %v378 = vmax.f32 %v336, 0.0
    %v379 = vmax.f32 %v338, 0.0
    %v380 = vmax.f32 %v342, 0.0
    %v381 = vmax.f32 %v344, 0.0
    %v382 = vmax.f32 %v348, 0.0
    %v383 = vmax.f32 %v350, 0.0
    %v384 = vld [vmem:[%s3] sm:$0xff]
    %v385 = vld [vmem:[%s3 + $0x8] sm:$0xff]
    %v386 = vld [vmem:[%s3 + $0x10] sm:$0xff]
    %v387 = vld [vmem:[%s3 + $0x18] sm:$0xff]
    %v388 = vld [vmem:[%s3 + $0x20] sm:$0xff]
    %v389 = vld [vmem:[%s3 + $0x28] sm:$0xff]
    %v390 = vld [vmem:[%s3 + $0x30] sm:$0xff]
    %v391 = vld [vmem:[%s3 + $0x38] sm:$0xff]
    %v392 = vld [vmem:[%s3 + $0x40] sm:$0xff]
    %v393 = vld [vmem:[%s3 + $0x48] sm:$0xff]
    %v394 = vld [vmem:[%s3 + $0x50] sm:$0xff]
    %v395 = vld [vmem:[%s3 + $0x58] sm:$0xff]
    %v396 = vld [vmem:[%s3 + $0x60] sm:$0xff]
    %v397 = vld [vmem:[%s3 + $0x68] sm:$0xff]
    %v398 = vld [vmem:[%s3 + $0x70] sm:$0xff]
    %v399 = vld [vmem:[%s3 + $0x78] sm:$0xff]
    %v400 = vld [vmem:[%s3 + $0x80] sm:$0xff]
    %v401 = vld [vmem:[%s3 + $0x88] sm:$0xff]
    %v402 = vld [vmem:[%s3 + $0x90] sm:$0xff]
    %v403 = vld [vmem:[%s3 + $0x98] sm:$0xff]
    %v404 = vld [vmem:[%s3 + $0xa0] sm:$0xff]
    %v405 = vld [vmem:[%s3 + $0xa8] sm:$0xff]
    %v406 = vld [vmem:[%s3 + $0xb0] sm:$0xff]
    %v407 = vld [vmem:[%s3 + $0xb8] sm:$0xff]
    %v408 = vld [vmem:[%s3 + $0xc0] sm:$0xff]
    %v409 = vld [vmem:[%s3 + $0xc8] sm:$0xff]
    %v410 = vld [vmem:[%s3 + $0xd0] sm:$0xff]
    %v411 = vld [vmem:[%s3 + $0xd8] sm:$0xff]
    %v412 = vld [vmem:[%s3 + $0xe0] sm:$0xff]
    %v413 = vld [vmem:[%s3 + $0xe8] sm:$0xff]
    %v414 = vld [vmem:[%s3 + $0xf0] sm:$0xff]
    %v415 = vld [vmem:[%s3 + $0xf8] sm:$0xff]
    %v416 = vld [vmem:[%s4] sm:$0xff]
    %v417 = vld [vmem:[%s4 + $0x8] sm:$0xff]
    %v418 = vld [vmem:[%s4 + $0x10] sm:$0xff]
    %v419 = vld [vmem:[%s4 + $0x18] sm:$0xff]
    %v420 = vld [vmem:[%s4 + $0x20] sm:$0xff]
    %v421 = vld [vmem:[%s4 + $0x28] sm:$0xff]
    %v422 = vld [vmem:[%s4 + $0x30] sm:$0xff]
    %v423 = vld [vmem:[%s4 + $0x38] sm:$0xff]
    %v424 = vld [vmem:[%s4 + $0x40] sm:$0xff]
    %v425 = vld [vmem:[%s4 + $0x48] sm:$0xff]
    %v426 = vld [vmem:[%s4 + $0x50] sm:$0xff]
    %v427 = vld [vmem:[%s4 + $0x58] sm:$0xff]
    %v428 = vld [vmem:[%s4 + $0x60] sm:$0xff]
    %v429 = vld [vmem:[%s4 + $0x68] sm:$0xff]
    %v430 = vld [vmem:[%s4 + $0x70] sm:$0xff]
    %v431 = vld [vmem:[%s4 + $0x78] sm:$0xff]
    %v432 = vld [vmem:[%s4 + $0x80] sm:$0xff]
    %v433 = vld [vmem:[%s4 + $0x88] sm:$0xff]
    %v434 = vld [vmem:[%s4 + $0x90] sm:$0xff]
    %v435 = vld [vmem:[%s4 + $0x98] sm:$0xff]
    %v436 = vld [vmem:[%s4 + $0xa0] sm:$0xff]
    %v437 = vld [vmem:[%s4 + $0xa8] sm:$0xff]
    %v438 = vld [vmem:[%s4 + $0xb0] sm:$0xff]
    %v439 = vld [vmem:[%s4 + $0xb8] sm:$0xff]
    %v440 = vld [vmem:[%s4 + $0xc0] sm:$0xff]
    %v441 = vld [vmem:[%s4 + $0xc8] sm:$0xff]
    %v442 = vld [vmem:[%s4 + $0xd0] sm:$0xff]
    %v443 = vld [vmem:[%s4 + $0xd8] sm:$0xff]
    %v444 = vld [vmem:[%s4 + $0xe0] sm:$0xff]
    %v445 = vld [vmem:[%s4 + $0xe8] sm:$0xff]
    %v446 = vld [vmem:[%s4 + $0xf0] sm:$0xff]
    %v447 = vld [vmem:[%s4 + $0xf8] sm:$0xff]
    %449 = vset.pattern.permute.xlu0 0
    %450 = vperm.xlu0 %449, %v416
    %v451 = vpop.permute.xlu0 %450
    %454 = vset.pattern.permute.xlu0 0
    %455 = vperm.xlu0 %454, %v417
    %v456 = vpop.permute.xlu0 %455
    %459 = vset.pattern.permute.xlu0 0
    %460 = vperm.xlu0 %459, %v418
    %v461 = vpop.permute.xlu0 %460
    %464 = vset.pattern.permute.xlu0 0
    %465 = vperm.xlu0 %464, %v419
    %v466 = vpop.permute.xlu0 %465
    %469 = vset.pattern.permute.xlu0 0
    %470 = vperm.xlu0 %469, %v420
    %v471 = vpop.permute.xlu0 %470
    %474 = vset.pattern.permute.xlu0 0
    %475 = vperm.xlu0 %474, %v421
    %v476 = vpop.permute.xlu0 %475
    %479 = vset.pattern.permute.xlu0 0
    %480 = vperm.xlu0 %479, %v422
    %v481 = vpop.permute.xlu0 %480
    %484 = vset.pattern.permute.xlu0 0
    %485 = vperm.xlu0 %484, %v423
    %v486 = vpop.permute.xlu0 %485
    %489 = vset.pattern.permute.xlu0 0
    %490 = vperm.xlu0 %489, %v424
    %v491 = vpop.permute.xlu0 %490
    %494 = vset.pattern.permute.xlu0 0
    %495 = vperm.xlu0 %494, %v425
    %v496 = vpop.permute.xlu0 %495
    %499 = vset.pattern.permute.xlu0 0
    %500 = vperm.xlu0 %499, %v426
    %v501 = vpop.permute.xlu0 %500
    %504 = vset.pattern.permute.xlu0 0
    %505 = vperm.xlu0 %504, %v427
    %v506 = vpop.permute.xlu0 %505
    %509 = vset.pattern.permute.xlu0 0
    %510 = vperm.xlu0 %509, %v428
    %v511 = vpop.permute.xlu0 %510
    %514 = vset.pattern.permute.xlu0 0
    %515 = vperm.xlu0 %514, %v429
    %v516 = vpop.permute.xlu0 %515
    %519 = vset.pattern.permute.xlu0 0
    %520 = vperm.xlu0 %519, %v430
    %v521 = vpop.permute.xlu0 %520
    %524 = vset.pattern.permute.xlu0 0
    %525 = vperm.xlu0 %524, %v431
    %v526 = vpop.permute.xlu0 %525
    %529 = vset.pattern.permute.xlu0 0
    %530 = vperm.xlu0 %529, %v432
    %v531 = vpop.permute.xlu0 %530
    %534 = vset.pattern.permute.xlu0 0
    %535 = vperm.xlu0 %534, %v433
    %v536 = vpop.permute.xlu0 %535
    %539 = vset.pattern.permute.xlu0 0
    %540 = vperm.xlu0 %539, %v434
    %v541 = vpop.permute.xlu0 %540
    %544 = vset.pattern.permute.xlu0 0
    %545 = vperm.xlu0 %544, %v435
    %v546 = vpop.permute.xlu0 %545
    %549 = vset.pattern.permute.xlu0 0
    %550 = vperm.xlu0 %549, %v436
    %v551 = vpop.permute.xlu0 %550
    %554 = vset.pattern.permute.xlu0 0
    %555 = vperm.xlu0 %554, %v437
    %v556 = vpop.permute.xlu0 %555
    %559 = vset.pattern.permute.xlu0 0
    %560 = vperm.xlu0 %559, %v438
    %v561 = vpop.permute.xlu0 %560
    %564 = vset.pattern.permute.xlu0 0
    %565 = vperm.xlu0 %564, %v439
    %v566 = vpop.permute.xlu0 %565
    %569 = vset.pattern.permute.xlu0 0
    %570 = vperm.xlu0 %569, %v440
    %v571 = vpop.permute.xlu0 %570
    %574 = vset.pattern.permute.xlu0 0
    %575 = vperm.xlu0 %574, %v441
    %v576 = vpop.permute.xlu0 %575
    %579 = vset.pattern.permute.xlu0 0
    %580 = vperm.xlu0 %579, %v442
    %v581 = vpop.permute.xlu0 %580
    %584 = vset.pattern.permute.xlu0 0
    %585 = vperm.xlu0 %584, %v443
    %v586 = vpop.permute.xlu0 %585
    %589 = vset.pattern.permute.xlu0 0
    %590 = vperm.xlu0 %589, %v444
    %v591 = vpop.permute.xlu0 %590
    %594 = vset.pattern.permute.xlu0 0
    %595 = vperm.xlu0 %594, %v445
    %v596 = vpop.permute.xlu0 %595
    %599 = vset.pattern.permute.xlu0 0
    %600 = vperm.xlu0 %599, %v446
    %v601 = vpop.permute.xlu0 %600
    %604 = vset.pattern.permute.xlu0 0
    %605 = vperm.xlu0 %604, %v447
    %v606 = vpop.permute.xlu0 %605
    %608 = vmatprep.subr.mxu0 %v383
    %609 = vmatpush1.msra.mxu0 %v382
    %610 = vmatprep.subr.mxu0 %v381
    %611 = vmatpush1.msra.mxu0 %v380
    %612 = vmatprep.subr.mxu0 %v379
    %613 = vmatpush1.msra.mxu0 %v378
    %614 = vmatprep.subr.mxu0 %v377
    %615 = vmatpush1.msra.mxu0 %v376
    %616 = vmatprep.subr.mxu0 %v375
    %617 = vmatpush1.msra.mxu0 %v374
    %618 = vmatprep.subr.mxu0 %v373
    %619 = vmatpush1.msra.mxu0 %v372
    %620 = vmatprep.subr.mxu0 %v371
    %621 = vmatpush1.msra.mxu0 %v370
    %622 = vmatprep.subr.mxu0 %v369
    %623 = vmatpush1.msra.mxu0 %v368
    %624 = vmatprep.subr.mxu0 %v367
    %625 = vmatpush1.msra.mxu0 %v366
    %626 = vmatprep.subr.mxu0 %v365
    %627 = vmatpush1.msra.mxu0 %v364
    %628 = vmatprep.subr.mxu0 %v363
    %629 = vmatpush1.msra.mxu0 %v362
    %630 = vmatprep.subr.mxu0 %v361
    %631 = vmatpush1.msra.mxu0 %v360
    %632 = vmatprep.subr.mxu0 %v359
    %633 = vmatpush1.msra.mxu0 %v358
    %634 = vmatprep.subr.mxu0 %v357
    %635 = vmatpush1.msra.mxu0 %v356
    %636 = vmatprep.subr.mxu0 %v355
    %637 = vmatpush1.msra.mxu0 %v354
    %638 = vmatprep.subr.mxu0 %v353
    %639 = vmatpush1.msra.mxu0 %v352
    %640 = vmatprep.subr.mxu0 0.0
    %641 = vmatpush2.msra.mxu0 0.0
    %642 = vmatprep.subr.mxu0 0.0
    %643 = vmatpush2.msra.mxu0 0.0
    %644 = vmatprep.subr.mxu0 0.0
    %645 = vmatpush2.msra.mxu0 0.0
    %646 = vmatprep.subr.mxu0 0.0
    %647 = vmatpush2.msra.mxu0 0.0
    %648 = vmatprep.subr.mxu0 0.0
    %649 = vmatpush2.msra.mxu0 0.0
    %650 = vmatprep.subr.mxu0 0.0
    %651 = vmatpush2.msra.mxu0 0.0
    %652 = vmatprep.subr.mxu0 0.0
    %653 = vmatpush2.msra.mxu0 0.0
    %654 = vmatprep.subr.mxu0 0.0
    %655 = vmatpush2.msra.mxu0 0.0
    %656 = vmatprep.subr.mxu0 0.0
    %657 = vmatpush2.msra.mxu0 0.0
    %658 = vmatprep.subr.mxu0 0.0
    %659 = vmatpush2.msra.mxu0 0.0
    %660 = vmatprep.subr.mxu0 0.0
    %661 = vmatpush2.msra.mxu0 0.0
    %662 = vmatprep.subr.mxu0 0.0
    %663 = vmatpush2.msra.mxu0 0.0
    %664 = vmatprep.subr.mxu0 0.0
    %665 = vmatpush2.msra.mxu0 0.0
    %666 = vmatprep.subr.mxu0 0.0
    %667 = vmatpush2.msra.mxu0 0.0
    %668 = vmatprep.subr.mxu0 0.0
    %669 = vmatpush2.msra.mxu0 0.0
    %670 = vmatprep.subr.mxu0 0.0
    %671 = vmatpush2.msra.mxu0 0.0
    %672 = vmatprep.mubr.f32.mxu0 0.0
    %673 = vmatmul.mubr.f32.gmra.mxu0 %v384
    %v674 = vpop.f32.mrf.mxu0
    %v675 = vadd.f32 %v451, %v674
    %v676 = vpop.f32.mrf.mxu0
    %v677 = vadd.f32 %v451, %v676
    %678 = vmatprep.mubr.f32.mxu0 0.0
    %679 = vmatmul.mubr.f32.gmra.mxu0 %v385
    %v680 = vpop.f32.mrf.mxu0
    %v681 = vadd.f32 %v456, %v680
    %v682 = vpop.f32.mrf.mxu0
    %v683 = vadd.f32 %v456, %v682
    %684 = vmatprep.mubr.f32.mxu0 0.0
    %685 = vmatmul.mubr.f32.gmra.mxu0 %v386
    %v686 = vpop.f32.mrf.mxu0
    %v687 = vadd.f32 %v461, %v686
    %v688 = vpop.f32.mrf.mxu0
    %v689 = vadd.f32 %v461, %v688
    %690 = vmatprep.mubr.f32.mxu0 0.0
    %691 = vmatmul.mubr.f32.gmra.mxu0 %v387
    %v692 = vpop.f32.mrf.mxu0
    %v693 = vadd.f32 %v466, %v692
    %v694 = vpop.f32.mrf.mxu0
    %v695 = vadd.f32 %v466, %v694
    %696 = vmatprep.mubr.f32.mxu0 0.0
    %697 = vmatmul.mubr.f32.gmra.mxu0 %v388
    %v698 = vpop.f32.mrf.mxu0
    %v699 = vadd.f32 %v471, %v698
    %v700 = vpop.f32.mrf.mxu0
    %v701 = vadd.f32 %v471, %v700
    %702 = vmatprep.mubr.f32.mxu0 0.0
    %703 = vmatmul.mubr.f32.gmra.mxu0 %v389
    %v704 = vpop.f32.mrf.mxu0
    %v705 = vadd.f32 %v476, %v704
    %v706 = vpop.f32.mrf.mxu0
    %v707 = vadd.f32 %v476, %v706
    %708 = vmatprep.mubr.f32.mxu0 0.0
    %709 = vmatmul.mubr.f32.gmra.mxu0 %v390
    %v710 = vpop.f32.mrf.mxu0
    %v711 = vadd.f32 %v481, %v710
    %v712 = vpop.f32.mrf.mxu0
    %v713 = vadd.f32 %v481, %v712
    %714 = vmatprep.mubr.f32.mxu0 0.0
    %715 = vmatmul.mubr.f32.gmra.mxu0 %v391
    %v716 = vpop.f32.mrf.mxu0
    %v717 = vadd.f32 %v486, %v716
    %v718 = vpop.f32.mrf.mxu0
    %v719 = vadd.f32 %v486, %v718
    %720 = vmatprep.mubr.f32.mxu0 0.0
    %721 = vmatmul.mubr.f32.gmra.mxu0 %v392
    %v722 = vpop.f32.mrf.mxu0
    %v723 = vadd.f32 %v491, %v722
    %v724 = vpop.f32.mrf.mxu0
    %v725 = vadd.f32 %v491, %v724
    %726 = vmatprep.mubr.f32.mxu0 0.0
    %727 = vmatmul.mubr.f32.gmra.mxu0 %v393
    %v728 = vpop.f32.mrf.mxu0
    %v729 = vadd.f32 %v496, %v728
    %v730 = vpop.f32.mrf.mxu0
    %v731 = vadd.f32 %v496, %v730
    %732 = vmatprep.mubr.f32.mxu0 0.0
    %733 = vmatmul.mubr.f32.gmra.mxu0 %v394
    %v734 = vpop.f32.mrf.mxu0
    %v735 = vadd.f32 %v501, %v734
    %v736 = vpop.f32.mrf.mxu0
    %v737 = vadd.f32 %v501, %v736
    %738 = vmatprep.mubr.f32.mxu0 0.0
    %739 = vmatmul.mubr.f32.gmra.mxu0 %v395
    %v740 = vpop.f32.mrf.mxu0
    %v741 = vadd.f32 %v506, %v740
    %v742 = vpop.f32.mrf.mxu0
    %v743 = vadd.f32 %v506, %v742
    %744 = vmatprep.mubr.f32.mxu0 0.0
    %745 = vmatmul.mubr.f32.gmra.mxu0 %v396
    %v746 = vpop.f32.mrf.mxu0
    %v747 = vadd.f32 %v511, %v746
    %v748 = vpop.f32.mrf.mxu0
    %v749 = vadd.f32 %v511, %v748
    %750 = vmatprep.mubr.f32.mxu0 0.0
    %751 = vmatmul.mubr.f32.gmra.mxu0 %v397
    %v752 = vpop.f32.mrf.mxu0
    %v753 = vadd.f32 %v516, %v752
    %v754 = vpop.f32.mrf.mxu0
    %v755 = vadd.f32 %v516, %v754
    %756 = vmatprep.mubr.f32.mxu0 0.0
    %757 = vmatmul.mubr.f32.gmra.mxu0 %v398
    %v758 = vpop.f32.mrf.mxu0
    %v759 = vadd.f32 %v521, %v758
    %v760 = vpop.f32.mrf.mxu0
    %v761 = vadd.f32 %v521, %v760
    %762 = vmatprep.mubr.f32.mxu0 0.0
    %763 = vmatmul.mubr.f32.gmra.mxu0 %v399
    %v764 = vpop.f32.mrf.mxu0
    %v765 = vadd.f32 %v526, %v764
    %v766 = vpop.f32.mrf.mxu0
    %v767 = vadd.f32 %v526, %v766
    %768 = vmatprep.mubr.f32.mxu0 0.0
    %769 = vmatmul.mubr.f32.gmra.mxu0 %v400
    %v770 = vpop.f32.mrf.mxu0
    %v771 = vadd.f32 %v531, %v770
    %v772 = vpop.f32.mrf.mxu0
    %v773 = vadd.f32 %v531, %v772
    %774 = vmatprep.mubr.f32.mxu0 0.0
    %775 = vmatmul.mubr.f32.gmra.mxu0 %v401
    %v776 = vpop.f32.mrf.mxu0
    %v777 = vadd.f32 %v536, %v776
    %v778 = vpop.f32.mrf.mxu0
    %v779 = vadd.f32 %v536, %v778
    %780 = vmatprep.mubr.f32.mxu0 0.0
    %781 = vmatmul.mubr.f32.gmra.mxu0 %v402
    %v782 = vpop.f32.mrf.mxu0
    %v783 = vadd.f32 %v541, %v782
    %v784 = vpop.f32.mrf.mxu0
    %v785 = vadd.f32 %v541, %v784
    %786 = vmatprep.mubr.f32.mxu0 0.0
    %787 = vmatmul.mubr.f32.gmra.mxu0 %v403
    %v788 = vpop.f32.mrf.mxu0
    %v789 = vadd.f32 %v546, %v788
    %v790 = vpop.f32.mrf.mxu0
    %v791 = vadd.f32 %v546, %v790
    %792 = vmatprep.mubr.f32.mxu0 0.0
    %793 = vmatmul.mubr.f32.gmra.mxu0 %v404
    %v794 = vpop.f32.mrf.mxu0
    %v795 = vadd.f32 %v551, %v794
    %v796 = vpop.f32.mrf.mxu0
    %v797 = vadd.f32 %v551, %v796
    %798 = vmatprep.mubr.f32.mxu0 0.0
    %799 = vmatmul.mubr.f32.gmra.mxu0 %v405
    %v800 = vpop.f32.mrf.mxu0
    %v801 = vadd.f32 %v556, %v800
    %v802 = vpop.f32.mrf.mxu0
    %v803 = vadd.f32 %v556, %v802
    %804 = vmatprep.mubr.f32.mxu0 0.0
    %805 = vmatmul.mubr.f32.gmra.mxu0 %v406
    %v806 = vpop.f32.mrf.mxu0
    %v807 = vadd.f32 %v561, %v806
    %v808 = vpop.f32.mrf.mxu0
    %v809 = vadd.f32 %v561, %v808
    %810 = vmatprep.mubr.f32.mxu0 0.0
    %811 = vmatmul.mubr.f32.gmra.mxu0 %v407
    %v812 = vpop.f32.mrf.mxu0
    %v813 = vadd.f32 %v566, %v812
    %v814 = vpop.f32.mrf.mxu0
    %v815 = vadd.f32 %v566, %v814
    %816 = vmatprep.mubr.f32.mxu0 0.0
    %817 = vmatmul.mubr.f32.gmra.mxu0 %v408
    %v818 = vpop.f32.mrf.mxu0
    %v819 = vadd.f32 %v571, %v818
    %v820 = vpop.f32.mrf.mxu0
    %v821 = vadd.f32 %v571, %v820
    %822 = vmatprep.mubr.f32.mxu0 0.0
    %823 = vmatmul.mubr.f32.gmra.mxu0 %v409
    %v824 = vpop.f32.mrf.mxu0
    %v825 = vadd.f32 %v576, %v824
    %v826 = vpop.f32.mrf.mxu0
    %v827 = vadd.f32 %v576, %v826
    %828 = vmatprep.mubr.f32.mxu0 0.0
    %829 = vmatmul.mubr.f32.gmra.mxu0 %v410
    %v830 = vpop.f32.mrf.mxu0
    %v831 = vadd.f32 %v581, %v830
    %v832 = vpop.f32.mrf.mxu0
    %v833 = vadd.f32 %v581, %v832
    %834 = vmatprep.mubr.f32.mxu0 0.0
    %835 = vmatmul.mubr.f32.gmra.mxu0 %v411
    %v836 = vpop.f32.mrf.mxu0
    %v837 = vadd.f32 %v586, %v836
    %v838 = vpop.f32.mrf.mxu0
    %v839 = vadd.f32 %v586, %v838
    %840 = vmatprep.mubr.f32.mxu0 0.0
    %841 = vmatmul.mubr.f32.gmra.mxu0 %v412
    %v842 = vpop.f32.mrf.mxu0
    %v843 = vadd.f32 %v591, %v842
    %v844 = vpop.f32.mrf.mxu0
    %v845 = vadd.f32 %v591, %v844
    %846 = vmatprep.mubr.f32.mxu0 0.0
    %847 = vmatmul.mubr.f32.gmra.mxu0 %v413
    %v848 = vpop.f32.mrf.mxu0
    %v849 = vadd.f32 %v596, %v848
    %v850 = vpop.f32.mrf.mxu0
    %v851 = vadd.f32 %v596, %v850
    %852 = vmatprep.mubr.f32.mxu0 0.0
    %853 = vmatmul.mubr.f32.gmra.mxu0 %v414
    %v854 = vpop.f32.mrf.mxu0
    %v855 = vadd.f32 %v601, %v854
    %v856 = vpop.f32.mrf.mxu0
    %v857 = vadd.f32 %v601, %v856
    %858 = vmatprep.mubr.f32.mxu0 0.0
    %859 = vmatmul.mubr.f32.gmra.mxu0 %v415
    %v860 = vpop.f32.mrf.mxu0
    %v861 = vadd.f32 %v606, %v860
    %v862 = vpop.f32.mrf.mxu0
    %v863 = vadd.f32 %v606, %v862
    %864 = vdwg.mxu0
    %v865 = vmax.f32 %v675, 0.0
    %v866 = vmax.f32 %v677, 0.0
    %v867 = vmax.f32 %v681, 0.0
    %v868 = vmax.f32 %v683, 0.0
    %v869 = vmax.f32 %v687, 0.0
    %v870 = vmax.f32 %v689, 0.0
    %v871 = vmax.f32 %v693, 0.0
    %v872 = vmax.f32 %v695, 0.0
    %v873 = vmax.f32 %v699, 0.0
    %v874 = vmax.f32 %v701, 0.0
    %v875 = vmax.f32 %v705, 0.0
    %v876 = vmax.f32 %v707, 0.0
    %v877 = vmax.f32 %v711, 0.0
    %v878 = vmax.f32 %v713, 0.0
    %v879 = vmax.f32 %v717, 0.0
    %v880 = vmax.f32 %v719, 0.0
    %v881 = vmax.f32 %v723, 0.0
    %v882 = vmax.f32 %v725, 0.0
    %v883 = vmax.f32 %v729, 0.0
    %v884 = vmax.f32 %v731, 0.0
    %v885 = vmax.f32 %v735, 0.0
    %v886 = vmax.f32 %v737, 0.0
    %v887 = vmax.f32 %v741, 0.0
    %v888 = vmax.f32 %v743, 0.0
    %v889 = vmax.f32 %v747, 0.0
    %v890 = vmax.f32 %v749, 0.0
    %v891 = vmax.f32 %v753, 0.0
    %v892 = vmax.f32 %v755, 0.0
    %v893 = vmax.f32 %v759, 0.0
    %v894 = vmax.f32 %v761, 0.0
    %v895 = vmax.f32 %v765, 0.0
    %v896 = vmax.f32 %v767, 0.0
    %v897 = vmax.f32 %v771, 0.0
    %v898 = vmax.f32 %v773, 0.0
    %v899 = vmax.f32 %v777, 0.0
    %v900 = vmax.f32 %v779, 0.0
    %v901 = vmax.f32 %v783, 0.0
    %v902 = vmax.f32 %v785, 0.0
    %v903 = vmax.f32 %v789, 0.0
    %v904 = vmax.f32 %v791, 0.0
    %v905 = vmax.f32 %v795, 0.0
    %v906 = vmax.f32 %v797, 0.0
    %v907 = vmax.f32 %v801, 0.0
    %v908 = vmax.f32 %v803, 0.0
    %v909 = vmax.f32 %v807, 0.0
    %v910 = vmax.f32 %v809, 0.0
    %v911 = vmax.f32 %v813, 0.0
    %v912 = vmax.f32 %v815, 0.0
    %v913 = vmax.f32 %v819, 0.0
    %v914 = vmax.f32 %v821, 0.0
    %v915 = vmax.f32 %v825, 0.0
    %v916 = vmax.f32 %v827, 0.0
    %v917 = vmax.f32 %v831, 0.0
    %v918 = vmax.f32 %v833, 0.0
    %v919 = vmax.f32 %v837, 0.0
    %v920 = vmax.f32 %v839, 0.0
    %v921 = vmax.f32 %v843, 0.0
    %v922 = vmax.f32 %v845, 0.0
    %v923 = vmax.f32 %v849, 0.0
    %v924 = vmax.f32 %v851, 0.0
    %v925 = vmax.f32 %v855, 0.0
    %v926 = vmax.f32 %v857, 0.0
    %v927 = vmax.f32 %v861, 0.0
    %v928 = vmax.f32 %v863, 0.0
    %v929 = vld [vmem:[%s5] sm:$0xff]
    %v930 = vld [vmem:[%s5 + $0x8] sm:$0xff]
    %v931 = vld [vmem:[%s5 + $0x10] sm:$0xff]
    %v932 = vld [vmem:[%s5 + $0x18] sm:$0xff]
    %v933 = vld [vmem:[%s5 + $0x20] sm:$0xff]
    %v934 = vld [vmem:[%s5 + $0x28] sm:$0xff]
    %v935 = vld [vmem:[%s5 + $0x30] sm:$0xff]
    %v936 = vld [vmem:[%s5 + $0x38] sm:$0xff]
    %v937 = vld [vmem:[%s5 + $0x40] sm:$0xff]
    %v938 = vld [vmem:[%s5 + $0x48] sm:$0xff]
    %v939 = vld [vmem:[%s5 + $0x50] sm:$0xff]
    %v940 = vld [vmem:[%s5 + $0x58] sm:$0xff]
    %v941 = vld [vmem:[%s5 + $0x60] sm:$0xff]
    %v942 = vld [vmem:[%s5 + $0x68] sm:$0xff]
    %v943 = vld [vmem:[%s5 + $0x70] sm:$0xff]
    %v944 = vld [vmem:[%s5 + $0x78] sm:$0xff]
    %v945 = vld [vmem:[%s5 + $0x80] sm:$0xff]
    %v946 = vld [vmem:[%s5 + $0x88] sm:$0xff]
    %v947 = vld [vmem:[%s5 + $0x90] sm:$0xff]
    %v948 = vld [vmem:[%s5 + $0x98] sm:$0xff]
    %v949 = vld [vmem:[%s5 + $0xa0] sm:$0xff]
    %v950 = vld [vmem:[%s5 + $0xa8] sm:$0xff]
    %v951 = vld [vmem:[%s5 + $0xb0] sm:$0xff]
    %v952 = vld [vmem:[%s5 + $0xb8] sm:$0xff]
    %v953 = vld [vmem:[%s5 + $0xc0] sm:$0xff]
    %v954 = vld [vmem:[%s5 + $0xc8] sm:$0xff]
    %v955 = vld [vmem:[%s5 + $0xd0] sm:$0xff]
    %v956 = vld [vmem:[%s5 + $0xd8] sm:$0xff]
    %v957 = vld [vmem:[%s5 + $0xe0] sm:$0xff]
    %v958 = vld [vmem:[%s5 + $0xe8] sm:$0xff]
    %v959 = vld [vmem:[%s5 + $0xf0] sm:$0xff]
    %v960 = vld [vmem:[%s5 + $0xf8] sm:$0xff]
    %962 = vset.pattern.permute.xlu0 0
    %963 = vperm.xlu0 %962, %v929
    %v964 = vpop.permute.xlu0 %963
    %967 = vset.pattern.permute.xlu0 0
    %968 = vperm.xlu0 %967, %v930
    %v969 = vpop.permute.xlu0 %968
    %972 = vset.pattern.permute.xlu0 0
    %973 = vperm.xlu0 %972, %v931
    %v974 = vpop.permute.xlu0 %973
    %977 = vset.pattern.permute.xlu0 0
    %978 = vperm.xlu0 %977, %v932
    %v979 = vpop.permute.xlu0 %978
    %982 = vset.pattern.permute.xlu0 0
    %983 = vperm.xlu0 %982, %v933
    %v984 = vpop.permute.xlu0 %983
    %987 = vset.pattern.permute.xlu0 0
    %988 = vperm.xlu0 %987, %v934
    %v989 = vpop.permute.xlu0 %988
    %992 = vset.pattern.permute.xlu0 0
    %993 = vperm.xlu0 %992, %v935
    %v994 = vpop.permute.xlu0 %993
    %997 = vset.pattern.permute.xlu0 0
    %998 = vperm.xlu0 %997, %v936
    %v999 = vpop.permute.xlu0 %998
    %1002 = vset.pattern.permute.xlu0 0
    %1003 = vperm.xlu0 %1002, %v937
    %v1004 = vpop.permute.xlu0 %1003
    %1007 = vset.pattern.permute.xlu0 0
    %1008 = vperm.xlu0 %1007, %v938
    %v1009 = vpop.permute.xlu0 %1008
    %1012 = vset.pattern.permute.xlu0 0
    %1013 = vperm.xlu0 %1012, %v939
    %v1014 = vpop.permute.xlu0 %1013
    %1017 = vset.pattern.permute.xlu0 0
    %1018 = vperm.xlu0 %1017, %v940
    %v1019 = vpop.permute.xlu0 %1018
    %1022 = vset.pattern.permute.xlu0 0
    %1023 = vperm.xlu0 %1022, %v941
    %v1024 = vpop.permute.xlu0 %1023
    %1027 = vset.pattern.permute.xlu0 0
    %1028 = vperm.xlu0 %1027, %v942
    %v1029 = vpop.permute.xlu0 %1028
    %1032 = vset.pattern.permute.xlu0 0
    %1033 = vperm.xlu0 %1032, %v943
    %v1034 = vpop.permute.xlu0 %1033
    %1037 = vset.pattern.permute.xlu0 0
    %1038 = vperm.xlu0 %1037, %v944
    %v1039 = vpop.permute.xlu0 %1038
    %1042 = vset.pattern.permute.xlu0 0
    %1043 = vperm.xlu0 %1042, %v945
    %v1044 = vpop.permute.xlu0 %1043
    %1047 = vset.pattern.permute.xlu0 0
    %1048 = vperm.xlu0 %1047, %v946
    %v1049 = vpop.permute.xlu0 %1048
    %1052 = vset.pattern.permute.xlu0 0
    %1053 = vperm.xlu0 %1052, %v947
    %v1054 = vpop.permute.xlu0 %1053
    %1057 = vset.pattern.permute.xlu0 0
    %1058 = vperm.xlu0 %1057, %v948
    %v1059 = vpop.permute.xlu0 %1058
    %1062 = vset.pattern.permute.xlu0 0
    %1063 = vperm.xlu0 %1062, %v949
    %v1064 = vpop.permute.xlu0 %1063
    %1067 = vset.pattern.permute.xlu0 0
    %1068 = vperm.xlu0 %1067, %v950
    %v1069 = vpop.permute.xlu0 %1068
    %1072 = vset.pattern.permute.xlu0 0
    %1073 = vperm.xlu0 %1072, %v951
    %v1074 = vpop.permute.xlu0 %1073
    %1077 = vset.pattern.permute.xlu0 0
    %1078 = vperm.xlu0 %1077, %v952
    %v1079 = vpop.permute.xlu0 %1078
    %1082 = vset.pattern.permute.xlu0 0
    %1083 = vperm.xlu0 %1082, %v953
    %v1084 = vpop.permute.xlu0 %1083
    %1087 = vset.pattern.permute.xlu0 0
    %1088 = vperm.xlu0 %1087, %v954
    %v1089 = vpop.permute.xlu0 %1088
    %1092 = vset.pattern.permute.xlu0 0
    %1093 = vperm.xlu0 %1092, %v955
    %v1094 = vpop.permute.xlu0 %1093
    %1097 = vset.pattern.permute.xlu0 0
    %1098 = vperm.xlu0 %1097, %v956
    %v1099 = vpop.permute.xlu0 %1098
    %1102 = vset.pattern.permute.xlu0 0
    %1103 = vperm.xlu0 %1102, %v957
    %v1104 = vpop.permute.xlu0 %1103
    %1107 = vset.pattern.permute.xlu0 0
    %1108 = vperm.xlu0 %1107, %v958
    %v1109 = vpop.permute.xlu0 %1108
    %1112 = vset.pattern.permute.xlu0 0
    %1113 = vperm.xlu0 %1112, %v959
    %v1114 = vpop.permute.xlu0 %1113
    %1117 = vset.pattern.permute.xlu0 0
    %1118 = vperm.xlu0 %1117, %v960
    %v1119 = vpop.permute.xlu0 %1118
    %v1121 = vmul.f32 %v865, %v964
    %v1122 = vmul.f32 %v866, %v964
    %v1123 = vmul.f32 %v867, %v969
    %v1124 = vmul.f32 %v868, %v969
    %v1125 = vmul.f32 %v869, %v974
    %v1126 = vmul.f32 %v870, %v974
    %v1127 = vmul.f32 %v871, %v979
    %v1128 = vmul.f32 %v872, %v979
    %v1129 = vmul.f32 %v873, %v984
    %v1130 = vmul.f32 %v874, %v984
    %v1131 = vmul.f32 %v875, %v989
    %v1132 = vmul.f32 %v876, %v989
    %v1133 = vmul.f32 %v877, %v994
    %v1134 = vmul.f32 %v878, %v994
    %v1135 = vmul.f32 %v879, %v999
    %v1136 = vmul.f32 %v880, %v999
    %v1137 = vmul.f32 %v881, %v1004
    %v1138 = vmul.f32 %v882, %v1004
    %v1139 = vmul.f32 %v883, %v1009
    %v1140 = vmul.f32 %v884, %v1009
    %v1141 = vmul.f32 %v885, %v1014
    %v1142 = vmul.f32 %v886, %v1014
    %v1143 = vmul.f32 %v887, %v1019
    %v1144 = vmul.f32 %v888, %v1019
    %v1145 = vmul.f32 %v889, %v1024
    %v1146 = vmul.f32 %v890, %v1024
    %v1147 = vmul.f32 %v891, %v1029
    %v1148 = vmul.f32 %v892, %v1029
    %v1149 = vmul.f32 %v893, %v1034
    %v1150 = vmul.f32 %v894, %v1034
    %v1151 = vmul.f32 %v895, %v1039
    %v1152 = vmul.f32 %v896, %v1039
    %v1153 = vmul.f32 %v897, %v1044
    %v1154 = vmul.f32 %v898, %v1044
    %v1155 = vmul.f32 %v899, %v1049
    %v1156 = vmul.f32 %v900, %v1049
    %v1157 = vmul.f32 %v901, %v1054
    %v1158 = vmul.f32 %v902, %v1054
    %v1159 = vmul.f32 %v903, %v1059
    %v1160 = vmul.f32 %v904, %v1059
    %v1161 = vmul.f32 %v905, %v1064
    %v1162 = vmul.f32 %v906, %v1064
    %v1163 = vmul.f32 %v907, %v1069
    %v1164 = vmul.f32 %v908, %v1069
    %v1165 = vmul.f32 %v909, %v1074
    %v1166 = vmul.f32 %v910, %v1074
    %v1167 = vmul.f32 %v911, %v1079
    %v1168 = vmul.f32 %v912, %v1079
    %v1169 = vmul.f32 %v913, %v1084
    %v1170 = vmul.f32 %v914, %v1084
    %v1171 = vmul.f32 %v915, %v1089
    %v1172 = vmul.f32 %v916, %v1089
    %v1173 = vmul.f32 %v917, %v1094
    %v1174 = vmul.f32 %v918, %v1094
    %v1175 = vmul.f32 %v919, %v1099
    %v1176 = vmul.f32 %v920, %v1099
    %v1177 = vmul.f32 %v921, %v1104
    %v1178 = vmul.f32 %v922, %v1104
    %v1179 = vmul.f32 %v923, %v1109
    %v1180 = vmul.f32 %v924, %v1109
    %v1181 = vmul.f32 %v925, %v1114
    %v1182 = vmul.f32 %v926, %v1114
    %v1183 = vmul.f32 %v927, %v1119
    %v1184 = vmul.f32 %v928, %v1119
    %v1185 = vadd.f32 %v1121, %v1123
    %v1186 = vadd.f32 %v1185, %v1125
    %v1187 = vadd.f32 %v1186, %v1127
    %v1188 = vadd.f32 %v1187, %v1129
    %v1189 = vadd.f32 %v1188, %v1131
    %v1190 = vadd.f32 %v1189, %v1133
    %v1191 = vadd.f32 %v1190, %v1135
    %v1192 = vadd.f32 %v1191, %v1137
    %v1193 = vadd.f32 %v1192, %v1139
    %v1194 = vadd.f32 %v1193, %v1141
    %v1195 = vadd.f32 %v1194, %v1143
    %v1196 = vadd.f32 %v1195, %v1145
    %v1197 = vadd.f32 %v1196, %v1147
    %v1198 = vadd.f32 %v1197, %v1149
    %v1199 = vadd.f32 %v1198, %v1151
    %v1200 = vadd.f32 %v1199, %v1153
    %v1201 = vadd.f32 %v1200, %v1155
    %v1202 = vadd.f32 %v1201, %v1157
    %v1203 = vadd.f32 %v1202, %v1159
    %v1204 = vadd.f32 %v1203, %v1161
    %v1205 = vadd.f32 %v1204, %v1163
    %v1206 = vadd.f32 %v1205, %v1165
    %v1207 = vadd.f32 %v1206, %v1167
    %v1208 = vadd.f32 %v1207, %v1169
    %v1209 = vadd.f32 %v1208, %v1171
    %v1210 = vadd.f32 %v1209, %v1173
    %v1211 = vadd.f32 %v1210, %v1175
    %v1212 = vadd.f32 %v1211, %v1177
    %v1213 = vadd.f32 %v1212, %v1179
    %v1214 = vadd.f32 %v1213, %v1181
    %v1215 = vadd.f32 %v1214, %v1183
    %v1216 = vrot.slane %v1215, 4
    %v1217 = vadd.f32 %v1215, %v1216
    %v1218 = vrot.slane %v1217, 2
    %v1219 = vadd.f32 %v1217, %v1218
    %v1220 = vrot.slane %v1219, 1
    %v1221 = vadd.f32 %v1219, %v1220
    %v1222 = vadd.f32 %v1122, %v1124
    %v1223 = vadd.f32 %v1222, %v1126
    %v1224 = vadd.f32 %v1223, %v1128
    %v1225 = vadd.f32 %v1224, %v1130
    %v1226 = vadd.f32 %v1225, %v1132
    %v1227 = vadd.f32 %v1226, %v1134
    %v1228 = vadd.f32 %v1227, %v1136
    %v1229 = vadd.f32 %v1228, %v1138
    %v1230 = vadd.f32 %v1229, %v1140
    %v1231 = vadd.f32 %v1230, %v1142
    %v1232 = vadd.f32 %v1231, %v1144
    %v1233 = vadd.f32 %v1232, %v1146
    %v1234 = vadd.f32 %v1233, %v1148
    %v1235 = vadd.f32 %v1234, %v1150
    %v1236 = vadd.f32 %v1235, %v1152
    %v1237 = vadd.f32 %v1236, %v1154
    %v1238 = vadd.f32 %v1237, %v1156
    %v1239 = vadd.f32 %v1238, %v1158
    %v1240 = vadd.f32 %v1239, %v1160
    %v1241 = vadd.f32 %v1240, %v1162
    %v1242 = vadd.f32 %v1241, %v1164
    %v1243 = vadd.f32 %v1242, %v1166
    %v1244 = vadd.f32 %v1243, %v1168
    %v1245 = vadd.f32 %v1244, %v1170
    %v1246 = vadd.f32 %v1245, %v1172
    %v1247 = vadd.f32 %v1246, %v1174
    %v1248 = vadd.f32 %v1247, %v1176
    %v1249 = vadd.f32 %v1248, %v1178
    %v1250 = vadd.f32 %v1249, %v1180
    %v1251 = vadd.f32 %v1250, %v1182
    %v1252 = vadd.f32 %v1251, %v1184
    %v1253 = vrot.slane %v1252, 4
    %v1254 = vadd.f32 %v1252, %v1253
    %v1255 = vrot.slane %v1254, 2
    %v1256 = vadd.f32 %v1254, %v1255
    %v1257 = vrot.slane %v1256, 1
    %v1258 = vadd.f32 %v1256, %v1257
    %s1259 = sld [smem:[#allocation2]]
    %v1260 = vstv %s1259
    %v1261 = vadd.f32 %v1221, %v1260
    %v1262 = vadd.f32 %v1258, %v1260
    %v1265 = vcombine.low %v1261, %v1262
    %v1267 = vunpack.c.l.s4 1966171168
    %v1268 = vunpack.c.0.s8 %v1267
    %v1269 = vlaneseq
    %v1270 = vshrl.u32 %v1269, 7
    %v1271 = vsub.s32 %v1268, %v1270
    %v1272 = vrot.slane %v1265, %v1271
    %v1274 = vunpack.c.l.s4 1966171168
    %v1275 = vunpack.c.0.s8 %v1274
    %v1276 = vlaneseq
    %v1277 = vshrl.u32 %v1276, 7
    %v1278 = vsub.s32 %v1275, %v1277
    %v1279 = vrot.slane %v1272, %v1278
    %v1281 = vlaneseq
    %vm1282 = vcmp.ge.s32.totalorder %v1281, 0
    %vm1283 = vcmp.lt.s32.totalorder %v1281, 256
    %vm1284 = vmand %vm1282, %vm1283
    %1285 = vst.msk [vmem:[#allocation3] sm:$0x3] %vm1284, %v1279
    // Predicated region
    $region30: #{tpu_custom_call.1} parent=1 // pred_check
      _
    $region31: #{tpu_custom_call.1} parent=1 // pred_check_branch
      %1287 = sbr.rel (0) target = $region33
    $region32: #{tpu_custom_call.1} parent=1 // pred_region
      %s1289 = ssub.s32 32, 32
      %1290 = vsyncadd [#allocation4], %s1289
      %s1292 = sshll.u32 [#allocation3], 4
      %s1293 = int_to_ptr.vmem [resolvable:$true] %s1292
      %1295 = dma.vmem_to_hbm [thread:$0]  %s1293, 32, %s7, [#allocation4]
    $region33: #{tpu_custom_call.1} parent=1 // pred_fallthru
      _
    // Predicated region
    $region34: #{tpu_custom_call.1} parent=1 // pred_check
      _
    $region35: #{tpu_custom_call.1} parent=1 // pred_check_branch
      %1297 = sbr.rel (0) target = $region37
    $region36: #{tpu_custom_call.1} parent=1 // pred_region
      %1298 = dma.done [#allocation4], 32
    $region37: #{tpu_custom_call.1} parent=1 // pred_fallthru
      _
    %1299 = vsyncpa [#allocation4], 1

</llo_original>
